<compile_context>
chip_gen: v6e
topology: v6e:2x2x1
jax: 0.10.0
libtpu: 0.0.40
codegen_flags: <defaults>
</compile_context>

<pallas_src>
import functools

import jax
import jax.numpy as jnp
from jax import lax
from jax.experimental import pallas as pl
from jax.experimental.pallas import tpu as pltpu


def _round_up(x: int, m: int) -> int:
    return ((x + m - 1) // m) * m


def _gaussian_tile_kernel(scale_ref, xr_ref, xc_ref, rn_ref, cn_ref, k_ref, *,
                          resident: bool):
    """One (TM, TN) tile of K = exp(scale * ||x_i - x_j||^2)."""
    scale = scale_ref[0]                               # SMEM scalar: -1/(2*sigma^2)
    if resident:
        # Col-side X is a single resident (n_pad, f_pad) block: slice the j-th
        # (TN, F) chunk (aligned dynamic sublane slice, no per-step re-DMA).
        tn = k_ref.shape[1]
        start = pl.multiple_of(pl.program_id(1) * tn, tn)
        xc = xc_ref[pl.ds(start, tn), :]
    else:
        xc = xc_ref[...]
    # Gram block on the MXU: (TM, F) x (TN, F)^T -> (TM, TN), f32 accumulation.
    gram = lax.dot_general(
        xr_ref[...], xc,
        dimension_numbers=(((1,), (1,)), ((), ())),
        preferred_element_type=jnp.float32)
    # ||x_i - x_j||^2 = ||x_i||^2 + ||x_j||^2 - 2 x_i.x_j ; clamp tiny negatives
    # from cancellation on/near the diagonal.
    d2 = jnp.maximum(rn_ref[...] + cn_ref[...] - 2.0 * gram, 0.0)
    k_ref[...] = jnp.exp(d2 * scale).astype(k_ref.dtype)


def gaussian_kernel_forward(x, sigma=None, track_running_stats=True, alpha=1.0,
                            block=256, gram_dtype=jnp.bfloat16,
                            out_dtype=jnp.float32,
                            resident_xc_byte_limit=8 << 20):
    """Pallas GaussianKernel.forward.

    Args:
        x: (N, F) float array.
        sigma: fixed bandwidth (used when track_running_stats=False).
        track_running_stats: if True, sigma^2 = alpha * mean(||x_i - x_j||^2).
        alpha: magnitude of the running sigma^2 estimate.
        block: square output tile size (multiple of 128; 256 matches v6e MXU).
        gram_dtype: MXU operand dtype (bf16 fast path; f32 for exact parity).
        out_dtype: dtype of K.  bfloat16 is the fast path on write-bound
            v5e/v6e (halves the N^2 HBM writeback); f32 kept as default for
            parity with the PyTorch reference.
        resident_xc_byte_limit: keep the col-side X fully resident in VMEM when
            its padded bf16/f32 footprint is below this many bytes.

    Returns:
        (K, sigma_square): K is (N, N); sigma_square mirrors the module's
        running-stat update (returned instead of mutated in place).
    """
    N, F = x.shape
    assert block % 128 == 0
    xf = x.astype(jnp.float32)

    # ---- O(N*F) prologue -------------------------------------------------
    # Center features: pairwise distances (hence sigma^2 and K) are invariant;
    # avoids catastrophic cancellation for un-centered inputs and shrinks the
    # bf16 Gram error.
    x_centered = xf - jnp.mean(xf, axis=0, keepdims=True)
    row_sq = jnp.sum(x_centered * x_centered, axis=1)            # (N,) ||x_i - x_bar||^2
    if track_running_stats:
        # mean_{i,j} ||x_i - x_j||^2 == 2 * mean_i ||x_i - x_bar||^2 (exact).
        sigma_square = alpha * 2.0 * jnp.mean(row_sq)
    else:
        assert sigma is not None
        sigma_square = jnp.asarray(sigma * sigma, jnp.float32)
    # NOTE: sigma_square == 0 (all rows identical) divides by zero, exactly as
    # the PyTorch module does.
    scale = jnp.reshape(-0.5 / sigma_square, (1,)).astype(jnp.float32)

    # ---- pad to lane/sublane-aligned shapes --------------------------------
    f_pad = _round_up(max(F, 1), 128)
    n_min = _round_up(max(N, 1), 128)        # >=128 so out tiles stay lane-dense
    if n_min >= block:
        tm = tn = block
        n_pad = _round_up(N, block)
    else:
        tm = tn = n_min
        n_pad = n_min

    x_p = jnp.pad(x_centered, ((0, n_pad - N), (0, f_pad - F))).astype(gram_dtype)
    rsq_p = jnp.pad(row_sq, (0, n_pad - N))
    rn_col = rsq_p.reshape(n_pad, 1)                   # row-block norms  -> (TM, 1)
    cn_row = rsq_p.reshape(1, n_pad)                   # col-block norms  -> (1, TN)

    gram_bytes = jnp.dtype(gram_dtype).itemsize
    out_bytes = jnp.dtype(out_dtype).itemsize
    resident = n_pad * f_pad * gram_bytes <= resident_xc_byte_limit

    if resident:
        xc_spec = pl.BlockSpec((n_pad, f_pad), lambda i, j: (0, 0))   # resident
        xc_buf_bytes = 2 * n_pad * f_pad * gram_bytes
        in_bytes = 2 * n_pad * f_pad * gram_bytes
    else:
        xc_spec = pl.BlockSpec((tn, f_pad), lambda i, j: (j, 0))      # streamed
        xc_buf_bytes = 2 * tn * f_pad * gram_bytes
        in_bytes = (1 + n_pad // tm) * n_pad * f_pad * gram_bytes

    # Double-buffered footprint (+ headroom); covers v5e's 16 MiB scoped default
    # and stays under v7x's 64 MiB physical VMEM.
    vmem_estimate = (2 * tm * f_pad * gram_bytes       # X row blocks
                     + xc_buf_bytes                    # X col block(s)
                     + 2 * tm * 4 + 2 * tn * 4         # row / col norms
                     + 2 * tm * tn * out_bytes)        # output blocks
    vmem_limit = int(min(max(2 * vmem_estimate, 16 << 20), 48 << 20))

    grid = (n_pad // tm, n_pad // tn)
    cost = pl.CostEstimate(
        flops=2 * n_pad * n_pad * f_pad,
        transcendentals=n_pad * n_pad,
        bytes_accessed=int(n_pad * n_pad * out_bytes + in_bytes + 2 * n_pad * 4))

    kernel = functools.partial(_gaussian_tile_kernel, resident=resident)
    k_pad = pl.pallas_call(
        kernel,
        grid=grid,
        in_specs=[
            pl.BlockSpec(memory_space=pltpu.MemorySpace.SMEM),   # scale (1,)
            pl.BlockSpec((tm, f_pad), lambda i, j: (i, 0)),      # X row block
            xc_spec,                                             # X col block
            pl.BlockSpec((tm, 1), lambda i, j: (i, 0)),          # ||x_i||^2
            pl.BlockSpec((1, tn), lambda i, j: (0, j)),          # ||x_j||^2
        ],
        out_specs=pl.BlockSpec((tm, tn), lambda i, j: (i, j)),
        out_shape=jax.ShapeDtypeStruct((n_pad, n_pad), out_dtype),
        compiler_params=pltpu.CompilerParams(
            dimension_semantics=("parallel", "parallel"),
            vmem_limit_bytes=vmem_limit),
        cost_estimate=cost,
    )(scale, x_p, x_p, rn_col, cn_row)

    return k_pad[:N, :N], sigma_square


def gaussian_kernel_reference(x, alpha=1.0):
    """Pure-JAX reference mirroring the PyTorch module, for verification."""
    d2 = jnp.sum((x[None, :, :] - x[:, None, :]) ** 2, axis=2)
    sigma_sq = alpha * jnp.mean(d2)
    return jnp.exp(-d2 / (2.0 * sigma_sq)), sigma_sq


if __name__ == "__main__":
    # GaussianKernel has no learned parameters; X is (minibatch, F).
    key = jax.random.PRNGKey(0)
    N, F = 8, 32
    x = jax.random.normal(key, (N, F), dtype=jnp.float32)
    K_ref, sig_ref = gaussian_kernel_reference(x, alpha=1.0)

    # Fast path (bf16 Gram operands, f32 accumulation / exp).
    K, sig = gaussian_kernel_forward(x, alpha=1.0)
    K = jax.block_until_ready(K)
    sig = jax.block_until_ready(sig)
    assert K.shape == (N, N)
    assert jnp.allclose(K, K_ref, atol=2e-2, rtol=2e-2), "kernel matrix mismatch (bf16 gram)"
    assert jnp.allclose(sig, sig_ref, atol=1e-4, rtol=1e-4), "sigma^2 mismatch (small)"

    # Exact-parity path (f32 Gram) on the same small input.
    K32, sig32 = gaussian_kernel_forward(x, alpha=1.0, gram_dtype=jnp.float32)
    K32 = jax.block_until_ready(K32)
    assert jnp.allclose(K32, K_ref, atol=1e-5, rtol=1e-5), "kernel matrix mismatch (f32 gram)"
    assert jnp.allclose(sig32, sig_ref, atol=1e-5, rtol=1e-5), "sigma^2 mismatch (f32 gram)"

    # Second check exercising the padded / resident-xc tiled path
    # (N, F not tile-aligned).
    N2, F2 = 192, 96
    x2 = jax.random.normal(jax.random.PRNGKey(1), (N2, F2), dtype=jnp.float32)
    K2, sig2 = gaussian_kernel_forward(x2, alpha=1.0)
    K2 = jax.block_until_ready(K2)
    K2_ref, sig2_ref = gaussian_kernel_reference(x2, alpha=1.0)
    assert K2.shape == (N2, N2)
    assert jnp.allclose(K2, K2_ref, atol=2e-2, rtol=2e-2), "kernel matrix mismatch (tiled)"
    assert jnp.allclose(sig2, sig2_ref, atol=1e-4, rtol=1e-4), "sigma^2 mismatch (tiled)"

    print("KERNEL_OK")
</pallas_src>

<mosaic_0001>
module attributes {stable_mosaic.version = 11 : i64} {
  func.func @_gaussian_tile_kernel(%arg0: i32, %arg1: i32, %arg2: memref<1xf32, #tpu.memory_space<smem>>, %arg3: memref<128x128xbf16, #tpu.memory_space<vmem>>, %arg4: memref<128x128xbf16, #tpu.memory_space<vmem>>, %arg5: memref<128x1xf32, #tpu.memory_space<vmem>>, %arg6: memref<1x128xf32, #tpu.memory_space<vmem>>, %arg7: memref<128x128xf32, #tpu.memory_space<vmem>>) attributes {dimension_semantics = [#tpu.dimension_semantics<parallel>, #tpu.dimension_semantics<parallel>], iteration_bounds = array<i64: 1, 1>, scalar_prefetch = 0 : i64, scratch_operands = 0 : i64, tpu.core_type = #tpu.core_type<tc>, window_params = [{transform_indices = @transform_0, window_bounds = array<i64: 1>}, {transform_indices = @transform_1, window_bounds = array<i64: 128, 128>}, {pipeline_mode = #tpu.pipeline_mode<synchronous>, transform_indices = @transform_2, window_bounds = array<i64: 128, 128>}, {transform_indices = @transform_3, window_bounds = array<i64: 128, 1>}, {transform_indices = @transform_4, window_bounds = array<i64: 1, 128>}, {transform_indices = @transform_5, window_bounds = array<i64: 128, 128>}]} {
    %c0 = arith.constant 0 : index
    %0 = memref.load %arg2[%c0] : memref<1xf32, #tpu.memory_space<smem>>
    %c128_i32 = arith.constant 128 : i32
    %1 = arith.muli %arg1, %c128_i32 : i32
    %2 = tpu.assume_multiple %1, 128 : i32
    %3 = arith.index_cast %2 : i32 to index
    %c0_0 = arith.constant 0 : index
    %4 = vector.load %arg4[%3, %c0_0] : memref<128x128xbf16, #tpu.memory_space<vmem>>, vector<128x128xbf16>
    %c0_1 = arith.constant 0 : index
    %c0_2 = arith.constant 0 : index
    %5 = vector.load %arg3[%c0_1, %c0_2] : memref<128x128xbf16, #tpu.memory_space<vmem>>, vector<128x128xbf16>
    %cst = arith.constant dense<0.000000e+00> : vector<128x128xf32>
    %6 = tpu.matmul %5, %4, %cst {dimension_numbers = #tpu.dot_dimension_numbers<[1], [1], [0], [0], [0, 0, 1, 0], [], []>} : vector<128x128xbf16>, vector<128x128xbf16>, vector<128x128xf32> -> vector<128x128xf32>
    %c0_3 = arith.constant 0 : index
    %c0_4 = arith.constant 0 : index
    %7 = vector.load %arg5[%c0_3, %c0_4] : memref<128x1xf32, #tpu.memory_space<vmem>>, vector<128x1xf32>
    %c0_5 = arith.constant 0 : index
    %c0_6 = arith.constant 0 : index
    %8 = vector.load %arg6[%c0_5, %c0_6] : memref<1x128xf32, #tpu.memory_space<vmem>>, vector<1x128xf32>
    %9 = vector.broadcast %7 : vector<128x1xf32> to vector<128x128xf32>
    %10 = vector.broadcast %8 : vector<1x128xf32> to vector<128x128xf32>
    %11 = arith.addf %9, %10 : vector<128x128xf32>
    %cst_7 = arith.constant 2.000000e+00 : f32
    %12 = vector.broadcast %cst_7 : f32 to vector<128x128xf32>
    %13 = arith.mulf %12, %6 : vector<128x128xf32>
    %14 = arith.subf %11, %13 : vector<128x128xf32>
    %cst_8 = arith.constant 0.000000e+00 : f32
    %15 = vector.broadcast %cst_8 : f32 to vector<128x128xf32>
    %16 = arith.maximumf %14, %15 : vector<128x128xf32>
    %17 = vector.broadcast %0 : f32 to vector<128x128xf32>
    %18 = arith.mulf %16, %17 : vector<128x128xf32>
    %19 = math.exp %18 : vector<128x128xf32>
    %c0_9 = arith.constant 0 : index
    %c0_10 = arith.constant 0 : index
    %20 = vector.load %arg7[%c0_9, %c0_10] : memref<128x128xf32, #tpu.memory_space<vmem>>, vector<128x128xf32>
    tpu.vector_store %arg7[%c0_9, %c0_10], %19 {strides = array<i32>} : memref<128x128xf32, #tpu.memory_space<vmem>>, vector<128x128xf32>,
    return
  }
  func.func @transform_0(%arg0: i32, %arg1: i32) -> i32 {
    %c0_i32 = arith.constant 0 : i32
    %c0_i32_0 = arith.constant 0 : i32
    return %c0_i32 : i32
  }
  func.func @transform_1(%arg0: i32, %arg1: i32) -> (i32, i32) {
    %c0_i32 = arith.constant 0 : i32
    %c0_i32_0 = arith.constant 0 : i32
    return %arg0, %c0_i32 : i32, i32
  }
  func.func @transform_2(%arg0: i32, %arg1: i32) -> (i32, i32) {
    %c0_i32 = arith.constant 0 : i32
    %c0_i32_0 = arith.constant 0 : i32
    %c0_i32_1 = arith.constant 0 : i32
    return %c0_i32, %c0_i32_0 : i32, i32
  }
  func.func @transform_3(%arg0: i32, %arg1: i32) -> (i32, i32) {
    %c0_i32 = arith.constant 0 : i32
    %c0_i32_0 = arith.constant 0 : i32
    return %arg0, %c0_i32 : i32, i32
  }
  func.func @transform_4(%arg0: i32, %arg1: i32) -> (i32, i32) {
    %c0_i32 = arith.constant 0 : i32
    %c0_i32_0 = arith.constant 0 : i32
    return %c0_i32, %arg1 : i32, i32
  }
  func.func @transform_5(%arg0: i32, %arg1: i32) -> (i32, i32) {
    %c0_i32 = arith.constant 0 : i32
    return %arg0, %arg1 : i32, i32
  }
}

</mosaic_0001>

<llo_original>
// kernel: tpu_custom_call.1
$region0: #{tpu_custom_call.1}
  #allocation0 [shape = 'u32[]', space=smem, size = 0x4, offset = 0x4, fixed_abs, tag = 'smem constant byte address 0x4 - core index']
  #allocation1 [shape = 'u32[144,128]{1,0:T(1,128)}', space=vmem, size = 0x12000, scoped, tag = 'internal scratch']
  #allocation2 [shape = 'f32[1]{0:T(128)S(6)}', space=smem, size = 0x200, scoped, tag = 'scoped memory for tpu_custom_call.1']
  %s0 = inlined_call_operand.<no memory space> [shape: f32[1], index: 0, kind: input, shape index: {}]
  %s1 = inlined_call_operand.vmem [shape: bf16[128,128], index: 1, kind: input, shape index: {}]
  %s2 = inlined_call_operand.vmem [shape: bf16[128,128], index: 2, kind: input, shape index: {}]
  %s3 = inlined_call_operand.vmem [shape: f32[128,1], index: 3, kind: input, shape index: {}]
  %s4 = inlined_call_operand.vmem [shape: f32[1,128], index: 4, kind: input, shape index: {}]
  %s5 = inlined_call_operand.hbm [shape: f32[128,128], index: 5, kind: output, shape index: {}]
  %s6 = sld [smem:[#allocation0]]
  $region30: #{tpu_custom_call.1} parent=0
    _
  %s8 = ssub.s32 1, %s6
  %s9 = scalar_select 0, %s8, %s6
  %10 = sst [smem:[#allocation2]] %s0
  $region1: #{tpu_custom_call.1} parent=0
    #allocation3 [shape = 'u8[65536]{0}', space=vmem, size = 0x10000, scoped, tag = 'output window, operand 0, single buffered']
    #allocation4 [shape = 's32[1]{0}', space=sflag, size = 0x4, scoped, tag = 'scoped memory for tpu_custom_call.1']
    %11 = vsyncpa [#allocation4], 0
    // Predicated region
    $region2: #{tpu_custom_call.1} parent=1 // pred_check
      _
    $region3: #{tpu_custom_call.1} parent=1 // pred_check_branch
      %13 = sbr.rel (0) target = $region5
    $region4: #{tpu_custom_call.1} parent=1 // pred_region
      _
    $region5: #{tpu_custom_call.1} parent=1 // pred_fallthru
      _
    // Predicated region
    $region6: #{tpu_custom_call.1} parent=1 // pred_check
      _
    $region7: #{tpu_custom_call.1} parent=1 // pred_check_branch
      %15 = sbr.rel (0) target = $region9
    $region8: #{tpu_custom_call.1} parent=1 // pred_region
      _
    $region9: #{tpu_custom_call.1} parent=1 // pred_fallthru
      _
    // Predicated region
    $region10: #{tpu_custom_call.1} parent=1 // pred_check
      _
    $region11: #{tpu_custom_call.1} parent=1 // pred_check_branch
      %17 = sbr.rel (0) target = $region13
    $region12: #{tpu_custom_call.1} parent=1 // pred_region
      _
    $region13: #{tpu_custom_call.1} parent=1 // pred_fallthru
      _
    // Predicated region
    $region14: #{tpu_custom_call.1} parent=1 // pred_check
      _
    $region15: #{tpu_custom_call.1} parent=1 // pred_check_branch
      %19 = sbr.rel (0) target = $region17
    $region16: #{tpu_custom_call.1} parent=1 // pred_region
      _
    $region17: #{tpu_custom_call.1} parent=1 // pred_fallthru
      _
    // Predicated region
    $region18: #{tpu_custom_call.1} parent=1 // pred_check
      _
    $region19: #{tpu_custom_call.1} parent=1 // pred_check_branch
      %21 = sbr.rel (0) target = $region21
    $region20: #{tpu_custom_call.1} parent=1 // pred_region
      _
    $region21: #{tpu_custom_call.1} parent=1 // pred_fallthru
      _
    %s23 = sld [smem:[#allocation2]]
    %s24 = smul.u32 0, 128
    %s25 = sshra.s32 %s24, 3
    %s26 = sand.u32 %s24, 7
    %s27 = smul.addr %s25, 4
    %s28 = scalar_lea.vmem %s2, %s27
    %v29 = vld [vmem:[%s28] sm:$0xf]
    %v30 = vld [vmem:[%s28 + $0x4] sm:$0xf]
    %v31 = vld [vmem:[%s28 + $0x8] sm:$0xf]
    %v32 = vld [vmem:[%s28 + $0xc] sm:$0xf]
    %v33 = vld [vmem:[%s28 + $0x10] sm:$0xf]
    %v34 = vld [vmem:[%s28 + $0x14] sm:$0xf]
    %v35 = vld [vmem:[%s28 + $0x18] sm:$0xf]
    %v36 = vld [vmem:[%s28 + $0x1c] sm:$0xf]
    %v37 = vld [vmem:[%s28 + $0x20] sm:$0xf]
    %v38 = vld [vmem:[%s28 + $0x24] sm:$0xf]
    %v39 = vld [vmem:[%s28 + $0x28] sm:$0xf]
    %v40 = vld [vmem:[%s28 + $0x2c] sm:$0xf]
    %v41 = vld [vmem:[%s28 + $0x30] sm:$0xf]
    %v42 = vld [vmem:[%s28 + $0x34] sm:$0xf]
    %v43 = vld [vmem:[%s28 + $0x38] sm:$0xf]
    %v44 = vld [vmem:[%s28 + $0x3c] sm:$0xf]
    %v45 = vld [vmem:[%s1] sm:$0xf]
    %v46 = vld [vmem:[%s1 + $0x4] sm:$0xf]
    %v47 = vld [vmem:[%s1 + $0x8] sm:$0xf]
    %v48 = vld [vmem:[%s1 + $0xc] sm:$0xf]
    %v49 = vld [vmem:[%s1 + $0x10] sm:$0xf]
    %v50 = vld [vmem:[%s1 + $0x14] sm:$0xf]
    %v51 = vld [vmem:[%s1 + $0x18] sm:$0xf]
    %v52 = vld [vmem:[%s1 + $0x1c] sm:$0xf]
    %v53 = vld [vmem:[%s1 + $0x20] sm:$0xf]
    %v54 = vld [vmem:[%s1 + $0x24] sm:$0xf]
    %v55 = vld [vmem:[%s1 + $0x28] sm:$0xf]
    %v56 = vld [vmem:[%s1 + $0x2c] sm:$0xf]
    %v57 = vld [vmem:[%s1 + $0x30] sm:$0xf]
    %v58 = vld [vmem:[%s1 + $0x34] sm:$0xf]
    %v59 = vld [vmem:[%s1 + $0x38] sm:$0xf]
    %v60 = vld [vmem:[%s1 + $0x3c] sm:$0xf]
    %v77 = vunpack.c.l.b16 %v45
    %v78 = vunpack.c.l.b16 %v46
    %v79 = vunpack.c.l.b16 %v47
    %v80 = vunpack.c.l.b16 %v48
    %v81 = vunpack.c.l.b16 %v49
    %v82 = vunpack.c.l.b16 %v50
    %v83 = vunpack.c.l.b16 %v51
    %v84 = vunpack.c.l.b16 %v52
    %v85 = vunpack.c.l.b16 %v53
    %v86 = vunpack.c.l.b16 %v54
    %v87 = vunpack.c.l.b16 %v55
    %v88 = vunpack.c.l.b16 %v56
    %v89 = vunpack.c.l.b16 %v57
    %v90 = vunpack.c.l.b16 %v58
    %v91 = vunpack.c.l.b16 %v59
    %v92 = vunpack.c.l.b16 %v60
    %v93 = vpack.c.b16 %v78, %v77
    %v94 = vpack.c.b16 %v80, %v79
    %v95 = vpack.c.b16 %v82, %v81
    %v96 = vpack.c.b16 %v84, %v83
    %v97 = vpack.c.b16 %v86, %v85
    %v98 = vpack.c.b16 %v88, %v87
    %v99 = vpack.c.b16 %v90, %v89
    %v100 = vpack.c.b16 %v92, %v91
    %v125 = vunpack.c.l.b16 %v29
    %v126 = vunpack.c.l.b16 %v30
    %v127 = vunpack.c.l.b16 %v31
    %v128 = vunpack.c.l.b16 %v32
    %v129 = vunpack.c.l.b16 %v33
    %v130 = vunpack.c.l.b16 %v34
    %v131 = vunpack.c.l.b16 %v35
    %v132 = vunpack.c.l.b16 %v36
    %v133 = vunpack.c.l.b16 %v37
    %v134 = vunpack.c.l.b16 %v38
    %v135 = vunpack.c.l.b16 %v39
    %v136 = vunpack.c.l.b16 %v40
    %v137 = vunpack.c.l.b16 %v41
    %v138 = vunpack.c.l.b16 %v42
    %v139 = vunpack.c.l.b16 %v43
    %v140 = vunpack.c.l.b16 %v44
    %v141 = vpack.c.b16 %v126, %v125
    %v142 = vpack.c.b16 %v128, %v127
    %v143 = vpack.c.b16 %v130, %v129
    %v144 = vpack.c.b16 %v132, %v131
    %v145 = vpack.c.b16 %v134, %v133
    %v146 = vpack.c.b16 %v136, %v135
    %v147 = vpack.c.b16 %v138, %v137
    %v148 = vpack.c.b16 %v140, %v139
    %157 = vmatprep.subr.bf16.mxu0 0
    %158 = vmatpush1.bf16.xpose.msra.mxu0 %v148
    %159 = vmatprep.subr.bf16.mxu0 0
    %160 = vmatpush1.bf16.xpose.msra.mxu0 %v147
    %161 = vmatprep.subr.bf16.mxu0 0
    %162 = vmatpush1.bf16.xpose.msra.mxu0 %v146
    %163 = vmatprep.subr.bf16.mxu0 0
    %164 = vmatpush1.bf16.xpose.msra.mxu0 %v145
    %165 = vmatprep.subr.bf16.mxu0 0
    %166 = vmatpush1.bf16.xpose.msra.mxu0 %v144
    %167 = vmatprep.subr.bf16.mxu0 0
    %168 = vmatpush1.bf16.xpose.msra.mxu0 %v143
    %169 = vmatprep.subr.bf16.mxu0 0
    %170 = vmatpush1.bf16.xpose.msra.mxu0 %v142
    %171 = vmatprep.subr.bf16.mxu0 0
    %172 = vmatpush1.bf16.xpose.msra.mxu0 %v141
    %173 = vmatprep.subr.bf16.mxu0 0
    %174 = vmatpush2.bf16.xpose.msra.mxu0 0
    %175 = vmatprep.subr.bf16.mxu0 0
    %176 = vmatpush2.bf16.xpose.msra.mxu0 0
    %177 = vmatprep.subr.bf16.mxu0 0
    %178 = vmatpush2.bf16.xpose.msra.mxu0 0
    %179 = vmatprep.subr.bf16.mxu0 0
    %180 = vmatpush2.bf16.xpose.msra.mxu0 0
    %181 = vmatprep.subr.bf16.mxu0 0
    %182 = vmatpush2.bf16.xpose.msra.mxu0 0
    %183 = vmatprep.subr.bf16.mxu0 0
    %184 = vmatpush2.bf16.xpose.msra.mxu0 0
    %185 = vmatprep.subr.bf16.mxu0 0
    %186 = vmatpush2.bf16.xpose.msra.mxu0 0
    %187 = vmatprep.subr.bf16.mxu0 0
    %188 = vmatpush2.bf16.xpose.msra.mxu0 0
    %189 = vmatprep.mubr.bf16.mxu0 0
    %190 = vmatmul.mubr.bf16.gmra.mxu0 %v93
    %v191 = vpop.f32.mrf.mxu0
    %v192 = vadd.f32 0.0, %v191
    %v193 = vpop.f32.mrf.mxu0
    %v194 = vpop.f32.mrf.mxu0
    %v195 = vadd.f32 0.0, %v194
    %v196 = vpop.f32.mrf.mxu0
    %197 = vmatprep.mubr.bf16.mxu0 0
    %198 = vmatmul.mubr.bf16.gmra.mxu0 %v94
    %v199 = vpop.f32.mrf.mxu0
    %v200 = vadd.f32 0.0, %v199
    %v201 = vpop.f32.mrf.mxu0
    %v202 = vpop.f32.mrf.mxu0
    %v203 = vadd.f32 0.0, %v202
    %v204 = vpop.f32.mrf.mxu0
    %205 = vmatprep.mubr.bf16.mxu0 0
    %206 = vmatmul.mubr.bf16.gmra.mxu0 %v95
    %v207 = vpop.f32.mrf.mxu0
    %v208 = vadd.f32 0.0, %v207
    %v209 = vpop.f32.mrf.mxu0
    %v210 = vpop.f32.mrf.mxu0
    %v211 = vadd.f32 0.0, %v210
    %v212 = vpop.f32.mrf.mxu0
    %213 = vmatprep.mubr.bf16.mxu0 0
    %214 = vmatmul.mubr.bf16.gmra.mxu0 %v96
    %v215 = vpop.f32.mrf.mxu0
    %v216 = vadd.f32 0.0, %v215
    %v217 = vpop.f32.mrf.mxu0
    %v218 = vpop.f32.mrf.mxu0
    %v219 = vadd.f32 0.0, %v218
    %v220 = vpop.f32.mrf.mxu0
    %221 = vmatprep.mubr.bf16.mxu0 0
    %222 = vmatmul.mubr.bf16.gmra.mxu0 %v97
    %v223 = vpop.f32.mrf.mxu0
    %v224 = vadd.f32 0.0, %v223
    %v225 = vpop.f32.mrf.mxu0
    %v226 = vpop.f32.mrf.mxu0
    %v227 = vadd.f32 0.0, %v226
    %v228 = vpop.f32.mrf.mxu0
    %229 = vmatprep.mubr.bf16.mxu0 0
    %230 = vmatmul.mubr.bf16.gmra.mxu0 %v98
    %v231 = vpop.f32.mrf.mxu0
    %v232 = vadd.f32 0.0, %v231
    %v233 = vpop.f32.mrf.mxu0
    %v234 = vpop.f32.mrf.mxu0
    %v235 = vadd.f32 0.0, %v234
    %v236 = vpop.f32.mrf.mxu0
    %237 = vmatprep.mubr.bf16.mxu0 0
    %238 = vmatmul.mubr.bf16.gmra.mxu0 %v99
    %v239 = vpop.f32.mrf.mxu0
    %v240 = vadd.f32 0.0, %v239
    %v241 = vpop.f32.mrf.mxu0
    %v242 = vpop.f32.mrf.mxu0
    %v243 = vadd.f32 0.0, %v242
    %v244 = vpop.f32.mrf.mxu0
    %245 = vmatprep.mubr.bf16.mxu0 0
    %246 = vmatmul.mubr.bf16.gmra.mxu0 %v100
    %v247 = vpop.f32.mrf.mxu0
    %v248 = vadd.f32 0.0, %v247
    %v249 = vpop.f32.mrf.mxu0
    %v250 = vpop.f32.mrf.mxu0
    %v251 = vadd.f32 0.0, %v250
    %v252 = vpop.f32.mrf.mxu0
    %253 = vdwg.mxu0
    %v254 = vld [vmem:[%s3] sm:$0xff]
    %v255 = vld [vmem:[%s3 + $0x8] sm:$0xff]
    %v256 = vld [vmem:[%s3 + $0x10] sm:$0xff]
    %v257 = vld [vmem:[%s3 + $0x18] sm:$0xff]
    %v258 = vld [vmem:[%s3 + $0x20] sm:$0xff]
    %v259 = vld [vmem:[%s3 + $0x28] sm:$0xff]
    %v260 = vld [vmem:[%s3 + $0x30] sm:$0xff]
    %v261 = vld [vmem:[%s3 + $0x38] sm:$0xff]
    %v262 = vld [vmem:[%s3 + $0x40] sm:$0xff]
    %v263 = vld [vmem:[%s3 + $0x48] sm:$0xff]
    %v264 = vld [vmem:[%s3 + $0x50] sm:$0xff]
    %v265 = vld [vmem:[%s3 + $0x58] sm:$0xff]
    %v266 = vld [vmem:[%s3 + $0x60] sm:$0xff]
    %v267 = vld [vmem:[%s3 + $0x68] sm:$0xff]
    %v268 = vld [vmem:[%s3 + $0x70] sm:$0xff]
    %v269 = vld [vmem:[%s3 + $0x78] sm:$0xff]
    %v270 = vld [vmem:[%s4] sm:$0x1]
    %272 = vset.pattern.permute.xlu0 0
    %273 = vperm.xlu0 %272, %v254
    %v274 = vpop.permute.xlu0 %273
    %277 = vset.pattern.permute.xlu0 0
    %278 = vperm.xlu0 %277, %v255
    %v279 = vpop.permute.xlu0 %278
    %282 = vset.pattern.permute.xlu0 0
    %283 = vperm.xlu0 %282, %v256
    %v284 = vpop.permute.xlu0 %283
    %287 = vset.pattern.permute.xlu0 0
    %288 = vperm.xlu0 %287, %v257
    %v289 = vpop.permute.xlu0 %288
    %292 = vset.pattern.permute.xlu0 0
    %293 = vperm.xlu0 %292, %v258
    %v294 = vpop.permute.xlu0 %293
    %297 = vset.pattern.permute.xlu0 0
    %298 = vperm.xlu0 %297, %v259
    %v299 = vpop.permute.xlu0 %298
    %302 = vset.pattern.permute.xlu0 0
    %303 = vperm.xlu0 %302, %v260
    %v304 = vpop.permute.xlu0 %303
    %307 = vset.pattern.permute.xlu0 0
    %308 = vperm.xlu0 %307, %v261
    %v309 = vpop.permute.xlu0 %308
    %312 = vset.pattern.permute.xlu0 0
    %313 = vperm.xlu0 %312, %v262
    %v314 = vpop.permute.xlu0 %313
    %317 = vset.pattern.permute.xlu0 0
    %318 = vperm.xlu0 %317, %v263
    %v319 = vpop.permute.xlu0 %318
    %322 = vset.pattern.permute.xlu0 0
    %323 = vperm.xlu0 %322, %v264
    %v324 = vpop.permute.xlu0 %323
    %327 = vset.pattern.permute.xlu0 0
    %328 = vperm.xlu0 %327, %v265
    %v329 = vpop.permute.xlu0 %328
    %332 = vset.pattern.permute.xlu0 0
    %333 = vperm.xlu0 %332, %v266
    %v334 = vpop.permute.xlu0 %333
    %337 = vset.pattern.permute.xlu0 0
    %338 = vperm.xlu0 %337, %v267
    %v339 = vpop.permute.xlu0 %338
    %342 = vset.pattern.permute.xlu0 0
    %343 = vperm.xlu0 %342, %v268
    %v344 = vpop.permute.xlu0 %343
    %347 = vset.pattern.permute.xlu0 0
    %348 = vperm.xlu0 %347, %v269
    %v349 = vpop.permute.xlu0 %348
    %v352 = vlaneseq
    %v353 = vshrl.u32 %v352, 7
    %v354 = vsub.s32 0, %v353
    %v355 = vrot.slane %v270, %v354
    %v357 = vadd.f32 %v274, %v355
    %v358 = vadd.f32 %v279, %v355
    %v359 = vadd.f32 %v284, %v355
    %v360 = vadd.f32 %v289, %v355
    %v361 = vadd.f32 %v294, %v355
    %v362 = vadd.f32 %v299, %v355
    %v363 = vadd.f32 %v304, %v355
    %v364 = vadd.f32 %v309, %v355
    %v365 = vadd.f32 %v314, %v355
    %v366 = vadd.f32 %v319, %v355
    %v367 = vadd.f32 %v324, %v355
    %v368 = vadd.f32 %v329, %v355
    %v369 = vadd.f32 %v334, %v355
    %v370 = vadd.f32 %v339, %v355
    %v371 = vadd.f32 %v344, %v355
    %v372 = vadd.f32 %v349, %v355
    %v373 = vmul.f32 %v192, 2.0
    %v374 = vmul.f32 %v195, 2.0
    %v375 = vmul.f32 %v200, 2.0
    %v376 = vmul.f32 %v203, 2.0
    %v377 = vmul.f32 %v208, 2.0
    %v378 = vmul.f32 %v211, 2.0
    %v379 = vmul.f32 %v216, 2.0
    %v380 = vmul.f32 %v219, 2.0
    %v381 = vmul.f32 %v224, 2.0
    %v382 = vmul.f32 %v227, 2.0
    %v383 = vmul.f32 %v232, 2.0
    %v384 = vmul.f32 %v235, 2.0
    %v385 = vmul.f32 %v240, 2.0
    %v386 = vmul.f32 %v243, 2.0
    %v387 = vmul.f32 %v248, 2.0
    %v388 = vmul.f32 %v251, 2.0
    %v389 = vsub.f32 %v357, %v373
    %v390 = vsub.f32 %v358, %v374
    %v391 = vsub.f32 %v359, %v375
    %v392 = vsub.f32 %v360, %v376
    %v393 = vsub.f32 %v361, %v377
    %v394 = vsub.f32 %v362, %v378
    %v395 = vsub.f32 %v363, %v379
    %v396 = vsub.f32 %v364, %v380
    %v397 = vsub.f32 %v365, %v381
    %v398 = vsub.f32 %v366, %v382
    %v399 = vsub.f32 %v367, %v383
    %v400 = vsub.f32 %v368, %v384
    %v401 = vsub.f32 %v369, %v385
    %v402 = vsub.f32 %v370, %v386
    %v403 = vsub.f32 %v371, %v387
    %v404 = vsub.f32 %v372, %v388
    %v405 = vmax.f32 %v389, 0.0
    %v406 = vmax.f32 %v390, 0.0
    %v407 = vmax.f32 %v391, 0.0
    %v408 = vmax.f32 %v392, 0.0
    %v409 = vmax.f32 %v393, 0.0
    %v410 = vmax.f32 %v394, 0.0
    %v411 = vmax.f32 %v395, 0.0
    %v412 = vmax.f32 %v396, 0.0
    %v413 = vmax.f32 %v397, 0.0
    %v414 = vmax.f32 %v398, 0.0
    %v415 = vmax.f32 %v399, 0.0
    %v416 = vmax.f32 %v400, 0.0
    %v417 = vmax.f32 %v401, 0.0
    %v418 = vmax.f32 %v402, 0.0
    %v419 = vmax.f32 %v403, 0.0
    %v420 = vmax.f32 %v404, 0.0
    %v421 = vstv %s23
    %v422 = vmul.f32 %v405, %v421
    %v423 = vmul.f32 %v406, %v421
    %v424 = vmul.f32 %v407, %v421
    %v425 = vmul.f32 %v408, %v421
    %v426 = vmul.f32 %v409, %v421
    %v427 = vmul.f32 %v410, %v421
    %v428 = vmul.f32 %v411, %v421
    %v429 = vmul.f32 %v412, %v421
    %v430 = vmul.f32 %v413, %v421
    %v431 = vmul.f32 %v414, %v421
    %v432 = vmul.f32 %v415, %v421
    %v433 = vmul.f32 %v416, %v421
    %v434 = vmul.f32 %v417, %v421
    %v435 = vmul.f32 %v418, %v421
    %v436 = vmul.f32 %v419, %v421
    %v437 = vmul.f32 %v420, %v421
    %v438 = vmul.f32 %v422, 1.442695
    %v439 = vpow.pop %v438
    %v440 = vmul.f32 %v423, 1.442695
    %v441 = vpow.pop %v440
    %v442 = vmul.f32 %v424, 1.442695
    %v443 = vpow.pop %v442
    %v444 = vmul.f32 %v425, 1.442695
    %v445 = vpow.pop %v444
    %v446 = vmul.f32 %v426, 1.442695
    %v447 = vpow.pop %v446
    %v448 = vmul.f32 %v427, 1.442695
    %v449 = vpow.pop %v448
    %v450 = vmul.f32 %v428, 1.442695
    %v451 = vpow.pop %v450
    %v452 = vmul.f32 %v429, 1.442695
    %v453 = vpow.pop %v452
    %v454 = vmul.f32 %v430, 1.442695
    %v455 = vpow.pop %v454
    %v456 = vmul.f32 %v431, 1.442695
    %v457 = vpow.pop %v456
    %v458 = vmul.f32 %v432, 1.442695
    %v459 = vpow.pop %v458
    %v460 = vmul.f32 %v433, 1.442695
    %v461 = vpow.pop %v460
    %v462 = vmul.f32 %v434, 1.442695
    %v463 = vpow.pop %v462
    %v464 = vmul.f32 %v435, 1.442695
    %v465 = vpow.pop %v464
    %v466 = vmul.f32 %v436, 1.442695
    %v467 = vpow.pop %v466
    %v468 = vmul.f32 %v437, 1.442695
    %v469 = vpow.pop %v468
    %470 = vst [vmem:[#allocation3] sm:$0xff] %v439
    %471 = vst [vmem:[#allocation3 + $0x8] sm:$0xff] %v441
    %472 = vst [vmem:[#allocation3 + $0x10] sm:$0xff] %v443
    %473 = vst [vmem:[#allocation3 + $0x18] sm:$0xff] %v445
    %474 = vst [vmem:[#allocation3 + $0x20] sm:$0xff] %v447
    %475 = vst [vmem:[#allocation3 + $0x28] sm:$0xff] %v449
    %476 = vst [vmem:[#allocation3 + $0x30] sm:$0xff] %v451
    %477 = vst [vmem:[#allocation3 + $0x38] sm:$0xff] %v453
    %478 = vst [vmem:[#allocation3 + $0x40] sm:$0xff] %v455
    %479 = vst [vmem:[#allocation3 + $0x48] sm:$0xff] %v457
    %480 = vst [vmem:[#allocation3 + $0x50] sm:$0xff] %v459
    %481 = vst [vmem:[#allocation3 + $0x58] sm:$0xff] %v461
    %482 = vst [vmem:[#allocation3 + $0x60] sm:$0xff] %v463
    %483 = vst [vmem:[#allocation3 + $0x68] sm:$0xff] %v465
    %484 = vst [vmem:[#allocation3 + $0x70] sm:$0xff] %v467
    %485 = vst [vmem:[#allocation3 + $0x78] sm:$0xff] %v469
    // Predicated region
    $region22: #{tpu_custom_call.1} parent=1 // pred_check
      _
    $region23: #{tpu_custom_call.1} parent=1 // pred_check_branch
      %487 = sbr.rel (0) target = $region25
    $region24: #{tpu_custom_call.1} parent=1 // pred_region
      %s489 = ssub.s32 2048, 2048
      %490 = vsyncadd [#allocation4], %s489
      %s491 = sshll.u32 [#allocation3], 4
      %s492 = int_to_ptr.vmem [resolvable:$true] %s491
      %497 = dma.vmem_to_hbm [thread:$0]  %s492, 2048, %s5, [#allocation4], 128, 128, 8
    $region25: #{tpu_custom_call.1} parent=1 // pred_fallthru
      _
    // Predicated region
    $region26: #{tpu_custom_call.1} parent=1 // pred_check
      _
    $region27: #{tpu_custom_call.1} parent=1 // pred_check_branch
      %499 = sbr.rel (0) target = $region29
    $region28: #{tpu_custom_call.1} parent=1 // pred_region
      %500 = dma.done [#allocation4], 2048
    $region29: #{tpu_custom_call.1} parent=1 // pred_fallthru
      _
    %501 = vsyncpa [#allocation4], 1

</llo_original>
